<compile_context>
chip_gen: v6e
topology: v6e:2x2x1
jax: 0.10.0
libtpu: 0.0.40
codegen_flags: <defaults>
</compile_context>

<pallas_src>
import functools
import math

import numpy as np
import jax
import jax.numpy as jnp
from jax.experimental import pallas as pl
from jax.experimental.pallas import tpu as pltpu


# ------------------------------ Pallas kernels ------------------------------ #

def _matmul_bias_kernel(x_ref, w_ref, b_ref, o_ref, *, slope):
    """o[b] = act(x[b] @ w + bias).  x:(1,M,K) w:(K,N) b:(1,N) o:(1,M,N)."""
    acc = jnp.dot(x_ref[0], w_ref[...], preferred_element_type=jnp.float32)
    acc = acc + b_ref[...]
    if slope is not None:
        acc = jnp.where(acc >= 0, acc, slope * acc)
    o_ref[0] = acc.astype(o_ref.dtype)


def _conv3x3s2_lrelu_kernel(x_ref, w_ref, b_ref, o_ref, *, ho, wo, slope):
    """3x3 / stride-2 / pad-1 conv + bias + LeakyReLU on a space-to-depth input.

    x_ref: (1, 4, Hp, Wp, Cin) phase slabs x_pad[ph::2, pw::2] of the zero
           padded NHWC input (Hp = Ho+1, Wp = Wo+1) -> every conv tap is a
           contiguous (Ho, Wo, Cin) window: no im2col, no strided loads.
    w_ref: (9, Cin, Cout) tap-major weights;  b_ref: (1, Cout)
    o_ref: (1, Ho*Wo, Cout) channels-last rows (lane dim = Cout).
    """
    cin = x_ref.shape[-1]
    cout = o_ref.shape[-1]
    acc = jnp.zeros((ho * wo, cout), jnp.float32)
    for kh in range(3):
        for kw in range(3):
            ph, dh = kh % 2, kh // 2
            pw, dw = kw % 2, kw // 2
            win = x_ref[0, ph * 2 + pw, dh:dh + ho, dw:dw + wo, :]  # (Ho,Wo,Cin)
            acc = acc + jnp.dot(win.reshape(ho * wo, cin),
                                w_ref[kh * 3 + kw],
                                preferred_element_type=jnp.float32)
    acc = acc + b_ref[...]
    acc = jnp.where(acc >= 0, acc, slope * acc)
    o_ref[0] = acc.astype(o_ref.dtype)


def _fpn_merge_kernel(m_ref, xc_ref, cl_ref, wl_ref, bl_ref, o_ref):
    """p = bilinear_upsample(x_coarse) + conv1x1(c_lateral), fully fused.

    m_ref : (HW, hw) dense bilinear interpolation matrix (kron of axis mats)
    xc_ref: (1, hw, C) coarse rows; cl_ref: (1, HW, Cl) lateral rows
    wl_ref: (Cl, C);   bl_ref: (1, C);   o_ref: (1, HW, C)
    """
    up = jnp.dot(m_ref[...], xc_ref[0], preferred_element_type=jnp.float32)
    lat = jnp.dot(cl_ref[0], wl_ref[...], preferred_element_type=jnp.float32)
    o_ref[0] = (up + lat + bl_ref[...]).astype(o_ref.dtype)


# ------------------------ memoized pallas_call factories --------------------- #

def _tpu_params():
    return pltpu.CompilerParams(dimension_semantics=("parallel",))


@functools.lru_cache(maxsize=None)
def _matmul_op(B, M, K, N, slope):
    kernel = functools.partial(_matmul_bias_kernel, slope=slope)
    return jax.jit(pl.pallas_call(
        kernel,
        out_shape=jax.ShapeDtypeStruct((B, M, N), jnp.float32),
        grid_spec=pltpu.PrefetchScalarGridSpec(
            num_scalar_prefetch=0, grid=(B,),
            in_specs=[pl.BlockSpec((1, M, K), lambda b: (b, 0, 0)),
                      pl.BlockSpec((K, N), lambda b: (0, 0)),
                      pl.BlockSpec((1, N), lambda b: (0, 0))],
            out_specs=pl.BlockSpec((1, M, N), lambda b: (b, 0, 0))),
        compiler_params=_tpu_params(),
    ))


@functools.lru_cache(maxsize=None)
def _conv3x3s2_op(B, Hp, Wp, Cin, Cout, slope):
    ho, wo = Hp - 1, Wp - 1
    kernel = functools.partial(_conv3x3s2_lrelu_kernel, ho=ho, wo=wo, slope=slope)
    cost = pl.CostEstimate(
        flops=2 * B * ho * wo * 9 * Cin * Cout, transcendentals=0,
        bytes_accessed=4 * (B * 4 * Hp * Wp * Cin + 9 * Cin * Cout
                            + Cout + B * ho * wo * Cout))
    return jax.jit(pl.pallas_call(
        kernel,
        out_shape=jax.ShapeDtypeStruct((B, ho * wo, Cout), jnp.float32),
        grid_spec=pltpu.PrefetchScalarGridSpec(
            num_scalar_prefetch=0, grid=(B,),
            in_specs=[pl.BlockSpec((1, 4, Hp, Wp, Cin),
                                   lambda b: (b, 0, 0, 0, 0)),
                      pl.BlockSpec((9, Cin, Cout), lambda b: (0, 0, 0)),
                      pl.BlockSpec((1, Cout), lambda b: (0, 0))],
            out_specs=pl.BlockSpec((1, ho * wo, Cout), lambda b: (b, 0, 0))),
        compiler_params=_tpu_params(),
        cost_estimate=cost,
    ))


@functools.lru_cache(maxsize=None)
def _fpn_merge_op(B, HW, hw, Cl, C):
    return jax.jit(pl.pallas_call(
        _fpn_merge_kernel,
        out_shape=jax.ShapeDtypeStruct((B, HW, C), jnp.float32),
        grid_spec=pltpu.PrefetchScalarGridSpec(
            num_scalar_prefetch=0, grid=(B,),
            in_specs=[pl.BlockSpec((HW, hw), lambda b: (0, 0)),
                      pl.BlockSpec((1, hw, C), lambda b: (b, 0, 0)),
                      pl.BlockSpec((1, HW, Cl), lambda b: (b, 0, 0)),
                      pl.BlockSpec((Cl, C), lambda b: (0, 0)),
                      pl.BlockSpec((1, C), lambda b: (0, 0))],
            out_specs=pl.BlockSpec((1, HW, C), lambda b: (b, 0, 0))),
        compiler_params=_tpu_params(),
    ))


# ----------------------------- op wrappers (NHWC) ---------------------------- #

def _conv1x1_pallas(x_nhwc, w, b):
    B, H, W, Cin = x_nhwc.shape
    Cout = w.shape[0]
    op = _matmul_op(B, H * W, Cin, Cout, None)
    out = op(x_nhwc.reshape(B, H * W, Cin),
             jnp.transpose(w.reshape(Cout, Cin), (1, 0)),
             b.reshape(1, Cout))
    return out.reshape(B, H, W, Cout)


def _conv3x3s2_lrelu_pallas(x_nhwc, w, b, slope=0.01):
    B, H, W, Cin = x_nhwc.shape
    Cout = w.shape[0]
    ho, wo = H // 2, W // 2
    hp, wp = ho + 1, wo + 1
    xp = jnp.pad(x_nhwc, ((0, 0), (1, 1), (1, 1), (0, 0)))
    # space-to-depth phase split: x_pad[ph::2, pw::2] slabs
    xp = xp.reshape(B, hp, 2, wp, 2, Cin).transpose(0, 2, 4, 1, 3, 5)
    xp = xp.reshape(B, 4, hp, wp, Cin)
    w_taps = jnp.transpose(w, (2, 3, 1, 0)).reshape(9, Cin, Cout)
    op = _conv3x3s2_op(B, hp, wp, Cin, Cout, slope)
    out = op(xp, w_taps, b.reshape(1, Cout))
    return out.reshape(B, ho, wo, Cout)


@functools.lru_cache(maxsize=None)
def _bilinear_axis_matrix(out_size, in_size):
    """Per-axis matrix for F.interpolate(mode='bilinear', align_corners=False)."""
    m = np.zeros((out_size, in_size), np.float32)
    scale = in_size / out_size
    for o in range(out_size):
        s = max((o + 0.5) * scale - 0.5, 0.0)
        i0 = min(int(np.floor(s)), in_size - 1)
        i1 = min(i0 + 1, in_size - 1)
        f = s - i0
        m[o, i0] += 1.0 - f
        m[o, i1] += f
    return m


@functools.lru_cache(maxsize=None)
def _upsample_matrix(H, W, h, w):
    return np.kron(_bilinear_axis_matrix(H, h), _bilinear_axis_matrix(W, w))


def _fpn_merge_pallas(x_coarse_nhwc, c_lat_nhwc, w_lat, b_lat):
    B, h, w, C = x_coarse_nhwc.shape
    _, H, W, Cl = c_lat_nhwc.shape
    m = jnp.asarray(_upsample_matrix(H, W, h, w))
    op = _fpn_merge_op(B, H * W, h * w, Cl, C)
    out = op(m, x_coarse_nhwc.reshape(B, h * w, C),
             c_lat_nhwc.reshape(B, H * W, Cl),
             jnp.transpose(w_lat.reshape(C, Cl), (1, 0)),
             b_lat.reshape(1, C))
    return out.reshape(B, H, W, C)


def _equal_linear_pallas(x, w, b, lr_mul=1.0):
    """EqualLinear (activation=None): x @ (w * scale).T + b * lr_mul."""
    Bm, K = x.shape
    N = w.shape[0]
    scale = 1.0 / math.sqrt(K) * lr_mul
    op = _matmul_op(1, Bm, K, N, None)
    out = op(x[None], jnp.transpose(w * scale, (1, 0)),
             (b * lr_mul).reshape(1, N))
    return out[0]


def _style_block_pallas(x_nhwc, bp):
    h = x_nhwc
    for (w, b) in bp["convs"]:
        h = _conv3x3s2_lrelu_pallas(h, w, b)
    h = h.reshape(h.shape[0], h.shape[-1])        # spatial reduced to 1x1
    return _equal_linear_pallas(h, bp["lin_w"], bp["lin_b"])


def encoder_head_pallas(c1, c2, c3, params, cfg):
    """Encoder4EditingMobileNet.forward from the backbone taps onward
    (progressive_stage == Inference, so every delta is applied)."""
    style_count = cfg["style_count"]
    coarse_ind, middle_ind = cfg["coarse_ind"], cfg["middle_ind"]
    c1n = jnp.transpose(c1, (0, 2, 3, 1))
    c2n = jnp.transpose(c2, (0, 2, 3, 1))
    c3n = jnp.transpose(c3, (0, 2, 3, 1))

    c3l = _conv1x1_pallas(c3n, params["lat0_w"], params["lat0_b"])   # latlayer0
    w0 = _style_block_pallas(c3l, params["styles"][0])
    w = jnp.tile(w0[:, None, :], (1, style_count, 1))

    features, p2 = c3l, None
    for i in range(1, style_count):
        if i == coarse_ind:
            p2 = _fpn_merge_pallas(c3l, c2n, params["lat1_w"], params["lat1_b"])
            features = p2
        elif i == middle_ind:
            p1 = _fpn_merge_pallas(p2, c1n, params["lat2_w"], params["lat2_b"])
            features = p1
        delta = _style_block_pallas(features, params["styles"][i])
        w = w.at[:, i].add(delta)
    return w + params["latent_avg"][None]


# ------------------------------- JAX reference ------------------------------- #

def _conv2d_ref(x, w, b, stride, pad):
    y = jax.lax.conv_general_dilated(
        x, w, window_strides=(stride, stride),
        padding=[(pad, pad), (pad, pad)],
        dimension_numbers=("NCHW", "OIHW", "NCHW"))
    return y + b[None, :, None, None]


def _leaky(x, slope=0.01):
    return jnp.where(x >= 0, x, slope * x)


def _style_block_ref(x, bp):
    h = x
    for (w, b) in bp["convs"]:
        h = _leaky(_conv2d_ref(h, w, b, 2, 1))
    h = h.reshape(h.shape[0], -1)
    scale = 1.0 / math.sqrt(bp["lin_w"].shape[1])
    return h @ (bp["lin_w"] * scale).T + bp["lin_b"]


def _upsample_add_ref(x, y):
    xu = jax.image.resize(x, (x.shape[0], x.shape[1], y.shape[2], y.shape[3]),
                          method="bilinear")
    return xu + y


def encoder_head_ref(c1, c2, c3, params, cfg):
    style_count = cfg["style_count"]
    coarse_ind, middle_ind = cfg["coarse_ind"], cfg["middle_ind"]
    c3l = _conv2d_ref(c3, params["lat0_w"], params["lat0_b"], 1, 0)
    w0 = _style_block_ref(c3l, params["styles"][0])
    w = jnp.tile(w0[:, None, :], (1, style_count, 1))
    features, p2 = c3l, None
    for i in range(1, style_count):
        if i == coarse_ind:
            p2 = _upsample_add_ref(
                c3l, _conv2d_ref(c2, params["lat1_w"], params["lat1_b"], 1, 0))
            features = p2
        elif i == middle_ind:
            p1 = _upsample_add_ref(
                p2, _conv2d_ref(c1, params["lat2_w"], params["lat2_b"], 1, 0))
            features = p1
        delta = _style_block_ref(features, params["styles"][i])
        w = w.at[:, i].add(delta)
    return w + params["latent_avg"][None]


# ------------------------------ parameter setup ------------------------------ #

def init_params(key, cfg):
    C = cfg["latent_dim"]
    keys = iter(jax.random.split(key, 512))

    def nrm(shape, std):
        return std * jax.random.normal(next(keys), shape, jnp.float32)

    p = {
        "lat0_w": nrm((C, cfg["c3_ch"], 1, 1), 1.0 / math.sqrt(cfg["c3_ch"])),
        "lat0_b": nrm((C,), 0.1),
        "lat1_w": nrm((C, cfg["c2_ch"], 1, 1), 1.0 / math.sqrt(cfg["c2_ch"])),
        "lat1_b": nrm((C,), 0.1),
        "lat2_w": nrm((C, cfg["c1_ch"], 1, 1), 1.0 / math.sqrt(cfg["c1_ch"])),
        "lat2_b": nrm((C,), 0.1),
        "latent_avg": nrm((cfg["style_count"], C), 0.1),
        "styles": [],
    }
    conv_std = math.sqrt(2.0 / (9 * C))
    for i in range(cfg["style_count"]):
        spatial = 8 if i < cfg["coarse_ind"] else (16 if i < cfg["middle_ind"] else 32)
        num_pools = int(math.log2(spatial))
        convs = [(nrm((C, C, 3, 3), conv_std), nrm((C,), 0.05))
                 for _ in range(num_pools)]
        p["styles"].append({
            "convs": convs,
            "lin_w": nrm((C, C), 1.0),   # EqualLinear applies its own 1/sqrt(C)
            "lin_b": nrm((C,), 0.1),
        })
    return p


# ----------------------------------- main ------------------------------------ #

if __name__ == "__main__":
    # Spec values: latent_dim=512, stylegan_size=1024 (18 styles).  Small demo
    # shapes keep the same structure: block spatials 8/16/32, backbone tap
    # channels 96/48/24, coarse_ind=3, middle_ind=7.
    cfg = dict(latent_dim=128, stylegan_size=32, coarse_ind=3, middle_ind=7,
               c1_ch=24, c2_ch=48, c3_ch=96)
    cfg["style_count"] = 2 * int(math.log2(cfg["stylegan_size"])) - 2   # = 8

    B = 2
    key = jax.random.PRNGKey(0)
    kp, k1, k2, k3 = jax.random.split(key, 4)
    params = init_params(kp, cfg)

    # Backbone feature taps (c1: stride 8, c2: stride 16, c3: stride 32).
    c1 = 0.5 * jax.random.normal(k1, (B, cfg["c1_ch"], 32, 32), jnp.float32)
    c2 = 0.5 * jax.random.normal(k2, (B, cfg["c2_ch"], 16, 16), jnp.float32)
    c3 = 0.5 * jax.random.normal(k3, (B, cfg["c3_ch"], 8, 8), jnp.float32)

    out = jax.block_until_ready(encoder_head_pallas(c1, c2, c3, params, cfg))
    ref = jax.block_until_ready(encoder_head_ref(c1, c2, c3, params, cfg))

    assert out.shape == (B, cfg["style_count"], cfg["latent_dim"])
    np.testing.assert_allclose(np.asarray(out), np.asarray(ref),
                               rtol=2e-2, atol=2e-2)
    print("KERNEL_OK")
</pallas_src>

<mosaic_0001>
module attributes {stable_mosaic.version = 11 : i64} {
  func.func @_matmul_bias_kernel(%arg0: i32, %arg1: memref<1x64x96xf32, #tpu.memory_space<vmem>>, %arg2: memref<96x128xf32, #tpu.memory_space<vmem>>, %arg3: memref<1x128xf32, #tpu.memory_space<vmem>>, %arg4: memref<1x64x128xf32, #tpu.memory_space<vmem>>) attributes {dimension_semantics = [#tpu.dimension_semantics<parallel>], iteration_bounds = array<i64: 2>, scalar_prefetch = 0 : i64, scratch_operands = 0 : i64, tpu.core_type = #tpu.core_type<tc>, window_params = [{transform_indices = @transform_0, window_bounds = array<i64: 1, 64, 96>}, {pipeline_mode = #tpu.pipeline_mode<synchronous>, transform_indices = @transform_1, window_bounds = array<i64: 96, 128>}, {pipeline_mode = #tpu.pipeline_mode<synchronous>, transform_indices = @transform_2, window_bounds = array<i64: 1, 128>}, {transform_indices = @transform_3, window_bounds = array<i64: 1, 64, 128>}]} {
    %c0 = arith.constant 0 : index
    %c0_0 = arith.constant 0 : index
    %c0_1 = arith.constant 0 : index
    %0 = vector.load %arg1[%c0, %c0_0, %c0_1] : memref<1x64x96xf32, #tpu.memory_space<vmem>>, vector<1x64x96xf32>
    %1 = vector.shape_cast %0 : vector<1x64x96xf32> to vector<64x96xf32>
    %c0_2 = arith.constant 0 : index
    %c0_3 = arith.constant 0 : index
    %2 = vector.load %arg2[%c0_2, %c0_3] : memref<96x128xf32, #tpu.memory_space<vmem>>, vector<96x128xf32>
    %cst = arith.constant dense<0.000000e+00> : vector<64x128xf32>
    %3 = tpu.matmul %1, %2, %cst {dimension_numbers = #tpu.dot_dimension_numbers<[1], [0], [0], [1], [0, 0, 1, 1], [], []>} : vector<64x96xf32>, vector<96x128xf32>, vector<64x128xf32> -> vector<64x128xf32>
    %c0_4 = arith.constant 0 : index
    %c0_5 = arith.constant 0 : index
    %4 = vector.load %arg3[%c0_4, %c0_5] : memref<1x128xf32, #tpu.memory_space<vmem>>, vector<1x128xf32>
    %5 = vector.broadcast %4 : vector<1x128xf32> to vector<64x128xf32>
    %6 = arith.addf %3, %5 : vector<64x128xf32>
    %c0_6 = arith.constant 0 : index
    %c0_7 = arith.constant 0 : index
    %c0_8 = arith.constant 0 : index
    %7 = vector.load %arg4[%c0_6, %c0_7, %c0_8] : memref<1x64x128xf32, #tpu.memory_space<vmem>>, vector<1x64x128xf32>
    %8 = vector.shape_cast %7 : vector<1x64x128xf32> to vector<64x128xf32>
    %9 = vector.shape_cast %6 : vector<64x128xf32> to vector<1x64x128xf32>
    tpu.vector_store %arg4[%c0_6, %c0_7, %c0_8], %9 {strides = array<i32>} : memref<1x64x128xf32, #tpu.memory_space<vmem>>, vector<1x64x128xf32>,
    return
  }
  func.func @transform_0(%arg0: i32) -> (i32, i32, i32) {
    %c0_i32 = arith.constant 0 : i32
    %c0_i32_0 = arith.constant 0 : i32
    %c0_i32_1 = arith.constant 0 : i32
    return %arg0, %c0_i32, %c0_i32_0 : i32, i32, i32
  }
  func.func @transform_1(%arg0: i32) -> (i32, i32) {
    %c0_i32 = arith.constant 0 : i32
    %c0_i32_0 = arith.constant 0 : i32
    %c0_i32_1 = arith.constant 0 : i32
    return %c0_i32, %c0_i32_0 : i32, i32
  }
  func.func @transform_2(%arg0: i32) -> (i32, i32) {
    %c0_i32 = arith.constant 0 : i32
    %c0_i32_0 = arith.constant 0 : i32
    %c0_i32_1 = arith.constant 0 : i32
    return %c0_i32, %c0_i32_0 : i32, i32
  }
  func.func @transform_3(%arg0: i32) -> (i32, i32, i32) {
    %c0_i32 = arith.constant 0 : i32
    %c0_i32_0 = arith.constant 0 : i32
    %c0_i32_1 = arith.constant 0 : i32
    return %arg0, %c0_i32, %c0_i32_0 : i32, i32, i32
  }
}

</mosaic_0001>

<llo_original>
// kernel: tpu_custom_call.1
$region0: #{tpu_custom_call.1}
  #allocation0 [shape = 'u32[]', space=smem, size = 0x4, offset = 0x4, fixed_abs, tag = 'smem constant byte address 0x4 - core index']
  #allocation1 [shape = 'u32[144,128]{1,0:T(1,128)}', space=vmem, size = 0x12000, scoped, tag = 'internal scratch']
  %s0 = inlined_call_operand.hbm [shape: f32[2,64,96], index: 0, kind: input, shape index: {}]
  %s1 = inlined_call_operand.hbm [shape: f32[96,128], index: 1, kind: input, shape index: {}]
  %s2 = inlined_call_operand.vmem [shape: f32[1,128], index: 2, kind: input, shape index: {}]
  %s3 = inlined_call_operand.hbm [shape: f32[2,64,128], index: 3, kind: output, shape index: {}]
  %s4 = sld [smem:[#allocation0]]
  $region53: #{tpu_custom_call.1} parent=0
    _
  %s6 = ssub.s32 1, %s4
  %s7 = scalar_select 0, %s6, %s4
  $region1: #{tpu_custom_call.1} parent=0
    #allocation2 [shape = 'u8[65536]{0}', space=vmem, size = 0x10000, scoped, tag = 'input window, operand 0']
    #allocation3 [shape = 's32[2]{0}', space=sflag, size = 0x8, scoped, tag = 'scoped memory for tpu_custom_call.1']
    #allocation4 [shape = 's32[2]{0}', space=sflag, size = 0x8, scoped, tag = 'scoped memory for tpu_custom_call.1']
    #allocation5 [shape = 'u8[49152]{0}', space=vmem, size = 0xc000, scoped, tag = 'input window, operand 1, single buffered']
    #allocation6 [shape = 's32[1]{0}', space=sflag, size = 0x4, scoped, tag = 'scoped memory for tpu_custom_call.1']
    #allocation7 [shape = 'u8[65536]{0}', space=vmem, size = 0x10000, scoped, tag = 'output window, operand 0']
    %8 = vsyncpa [#allocation3], 0
    %s9 = scalar_lea.sflag [#allocation3], 1
    %10 = vsyncpa %s9, 0
    %11 = vsyncpa [#allocation6], 0
    %12 = vsyncpa [#allocation4], 0
    %s13 = scalar_lea.sflag [#allocation4], 1
    %14 = vsyncpa %s13, 0
    loop: start=0, step=1, limit=4
    $region2: #{tpu_custom_call.1} parent=1 // loop_pre_header
      _
    $region3: #{tpu_custom_call.1} parent=1 // loop_header
      %s16 = sphi 0, %s20
      %p17 = scmp.ge.s32.totalorder %s16, 4
      %s26 = sphi 0, %s28
      %s29 = sphi 0, %s26
      %s30 = sphi 0, %s29
      %s46 = sphi 0, %s30
      %s50 = sphi 0, %s50
      %s52 = sphi 0, %s50
      %s53 = sphi 0, %s52
      %s67 = sphi 0, %s53
      %s71 = sphi 0, %s71
      %s73 = sphi 0, %s71
      %s74 = sphi 0, %s73
      %s88 = sphi 0, %s74
      %s94 = sphi 0, %s96
      %s97 = sphi 0, %s94
      %s98 = sphi 0, %s97
      %s114 = sphi 0, %s98
    $region4: #{tpu_custom_call.1} parent=1 // loop_header_branch
      %19 = sbr.rel (%p17) target = $region8
    $region5: #{tpu_custom_call.1} parent=1 // loop_body
      %s21 = ssub.s32 %s16, 1
      %s22 = ssub.s32 %s16, 2
      %s23 = sadd.s32 %s16, 1
      %s24 = ssub.s32 %s16, %s23
      %p25 = scmp.eq.s32.totalorder %s24, 0
      %s27 = sadd.s32 %s26, 1
      %s28 = scalar_select %p25, %s26, %s27
      %p31 = pneg %p25
      %p32 = scmp.eq.s32.totalorder %s16, 1
      %p33 = por %p31, %p32
      %p34 = scmp.ne.s32.totalorder %s26, %s29
      %p35 = scmp.eq.s32.totalorder %s16, 0
      %p36 = por %p34, %p35
      %p37 = scmp.ne.s32.totalorder %s26, %s29
      %p38 = scmp.eq.s32.totalorder %s21, 1
      %p39 = por %p37, %p38
      %p40 = scmp.ne.s32.totalorder %s29, %s30
      %p41 = scmp.eq.s32.totalorder %s21, 0
      %p42 = por %p40, %p41
      %p43 = scmp.ne.s32.totalorder %s29, %s30
      %p44 = scmp.eq.s32.totalorder %s22, 1
      %p45 = por %p43, %p44
      %p47 = scmp.ne.s32.totalorder %s30, %s46
      %p48 = scmp.eq.s32.totalorder %s22, 0
      %p49 = por %p47, %p48
      %s51 = sadd.s32 %s50, 1
      %p54 = scmp.eq.s32.totalorder %s16, 1
      %p55 = scmp.ne.s32.totalorder %s50, %s52
      %p56 = scmp.eq.s32.totalorder %s16, 0
      %p57 = por %p55, %p56
      %p58 = scmp.ne.s32.totalorder %s50, %s52
      %p59 = scmp.eq.s32.totalorder %s21, 1
      %p60 = por %p58, %p59
      %p61 = scmp.ne.s32.totalorder %s52, %s53
      %p62 = scmp.eq.s32.totalorder %s21, 0
      %p63 = por %p61, %p62
      %p64 = scmp.ne.s32.totalorder %s52, %s53
      %p65 = scmp.eq.s32.totalorder %s22, 1
      %p66 = por %p64, %p65
      %p68 = scmp.ne.s32.totalorder %s53, %s67
      %p69 = scmp.eq.s32.totalorder %s22, 0
      %p70 = por %p68, %p69
      %s72 = sadd.s32 %s71, 1
      %p75 = scmp.eq.s32.totalorder %s16, 1
      %p76 = scmp.ne.s32.totalorder %s71, %s73
      %p77 = scmp.eq.s32.totalorder %s16, 0
      %p78 = por %p76, %p77
      %p79 = scmp.ne.s32.totalorder %s71, %s73
      %p80 = scmp.eq.s32.totalorder %s21, 1
      %p81 = por %p79, %p80
      %p82 = scmp.ne.s32.totalorder %s73, %s74
      %p83 = scmp.eq.s32.totalorder %s21, 0
      %p84 = por %p82, %p83
      %p85 = scmp.ne.s32.totalorder %s73, %s74
      %p86 = scmp.eq.s32.totalorder %s22, 1
      %p87 = por %p85, %p86
      %p89 = scmp.ne.s32.totalorder %s74, %s88
      %p90 = scmp.eq.s32.totalorder %s22, 0
      %p91 = por %p89, %p90
      %s92 = ssub.s32 %s16, %s23
      %p93 = scmp.eq.s32.totalorder %s92, 0
      %s95 = sadd.s32 %s94, 1
      %s96 = scalar_select %p93, %s94, %s95
      %p99 = pneg %p93
      %p100 = scmp.eq.s32.totalorder %s16, 1
      %p101 = por %p99, %p100
      %p102 = scmp.ne.s32.totalorder %s94, %s97
      %p103 = scmp.eq.s32.totalorder %s16, 0
      %p104 = por %p102, %p103
      %p105 = scmp.ne.s32.totalorder %s94, %s97
      %p106 = scmp.eq.s32.totalorder %s21, 1
      %p107 = por %p105, %p106
      %p108 = scmp.ne.s32.totalorder %s97, %s98
      %p109 = scmp.eq.s32.totalorder %s21, 0
      %p110 = por %p108, %p109
      %p111 = scmp.ne.s32.totalorder %s97, %s98
      %p112 = scmp.eq.s32.totalorder %s22, 1
      %p113 = por %p111, %p112
      %p115 = scmp.ne.s32.totalorder %s98, %s114
      %p116 = scmp.eq.s32.totalorder %s22, 0
      %p117 = por %p115, %p116
      %p118 = scmp.le.s32.totalorder 1, %s16
      %p119 = scmp.lt.s32.totalorder %s16, 3
      %p120 = pnand %p118, %p119
      %p121 = pneg %p120
      // Predicated region
      $region9: #{tpu_custom_call.1} parent=5 // pred_check
        _
      $region10: #{tpu_custom_call.1} parent=5 // pred_check_branch
        %123 = sbr.rel (%p120) target = $region12
      $region11: #{tpu_custom_call.1} parent=5 // pred_region
        %s124 = ssub.s32 %s16, 1
        // Predicated region
        $region13: #{tpu_custom_call.1} parent=11 // pred_check
          %p125 = pneg %p63
        $region14: #{tpu_custom_call.1} parent=11 // pred_check_branch
          %127 = sbr.rel (%p125) target = $region16
        $region15: #{tpu_custom_call.1} parent=11 // pred_region
          %s129 = ssub.s32 1536, 1536
          %130 = vsyncadd [#allocation6], %s129
          %s131 = sshll.u32 [#allocation5], 4
          %s132 = int_to_ptr.vmem [resolvable:$true] %s131
          %137 = dma.hbm_to_vmem [thread:$0]  %s1, 1536, %s132, [#allocation6], 128, 128, 8
        $region16: #{tpu_custom_call.1} parent=11 // pred_fallthru
          _
        // Predicated region
        $region17: #{tpu_custom_call.1} parent=11 // pred_check
          %p138 = pneg %p84
        $region18: #{tpu_custom_call.1} parent=11 // pred_check_branch
          %140 = sbr.rel (%p138) target = $region20
        $region19: #{tpu_custom_call.1} parent=11 // pred_region
          _
        $region20: #{tpu_custom_call.1} parent=11 // pred_fallthru
          _
      $region12: #{tpu_custom_call.1} parent=5 // pred_fallthru
        _
      %p141 = scmp.lt.s32.totalorder %s16, 2
      // Predicated region
      $region21: #{tpu_custom_call.1} parent=5 // pred_check
        %p142 = pneg %p141
      $region22: #{tpu_custom_call.1} parent=5 // pred_check_branch
        %144 = sbr.rel (%p142) target = $region24
      $region23: #{tpu_custom_call.1} parent=5 // pred_region
        // Predicated region
        $region25: #{tpu_custom_call.1} parent=23 // pred_check
          %p145 = pneg %p36
        $region26: #{tpu_custom_call.1} parent=23 // pred_check_branch
          %147 = sbr.rel (%p145) target = $region28
        $region27: #{tpu_custom_call.1} parent=23 // pred_region
          %s148 = sand.u32 %s26, 1
          %s149 = scalar_lea.sflag [#allocation3], %s148
          %s150 = sand.u32 %s26, 1
          %s151 = smul.addr %s150, 64
          %s152 = scalar_lea.vmem [#allocation2], %s151
          %s154 = ssub.s32 1024, 1024
          %155 = vsyncadd %s149, %s154
          %s156 = smul.addr %s16, 8
          %s157 = smul.addr %s156, 128
          %s158 = scalar_lea.hbm %s0, %s157
          %s159 = sshll.u32 %s152, 4
          %s160 = int_to_ptr.vmem [resolvable:$true] %s159
          %165 = dma.hbm_to_vmem [thread:$0]  %s158, 1024, %s160, %s149, 128, 128, 8
        $region28: #{tpu_custom_call.1} parent=23 // pred_fallthru
          _
      $region24: #{tpu_custom_call.1} parent=5 // pred_fallthru
        _
      %p166 = scmp.le.s32.totalorder 1, %s16
      %p167 = scmp.lt.s32.totalorder %s16, 3
      %p168 = pnand %p166, %p167
      %p169 = pneg %p168
      // Predicated region
      $region29: #{tpu_custom_call.1} parent=5 // pred_check
        _
      $region30: #{tpu_custom_call.1} parent=5 // pred_check_branch
        %171 = sbr.rel (%p168) target = $region32
      $region31: #{tpu_custom_call.1} parent=5 // pred_region
        %s172 = ssub.s32 %s16, 1
        %s173 = sand.u32 %s29, 1
        %s174 = scalar_lea.sflag [#allocation3], %s173
        %s175 = sand.u32 %s29, 1
        %s176 = smul.addr %s175, 64
        %s177 = scalar_lea.vmem [#allocation2], %s176
        // Predicated region
        $region33: #{tpu_custom_call.1} parent=31 // pred_check
          %p178 = pneg %p42
        $region34: #{tpu_custom_call.1} parent=31 // pred_check_branch
          %180 = sbr.rel (%p178) target = $region36
        $region35: #{tpu_custom_call.1} parent=31 // pred_region
          %181 = dma.done %s174, 1024
        $region36: #{tpu_custom_call.1} parent=31 // pred_fallthru
          _
        // Predicated region
        $region37: #{tpu_custom_call.1} parent=31 // pred_check
          %p182 = pneg %p63
        $region38: #{tpu_custom_call.1} parent=31 // pred_check_branch
          %184 = sbr.rel (%p182) target = $region40
        $region39: #{tpu_custom_call.1} parent=31 // pred_region
          %185 = dma.done [#allocation6], 1536
        $region40: #{tpu_custom_call.1} parent=31 // pred_fallthru
          _
        %s186 = sand.u32 %s29, 1
        %s187 = scalar_lea.sflag [#allocation3], %s186
        %s188 = sand.u32 %s29, 1
        %s189 = smul.addr %s188, 64
        %s190 = scalar_lea.vmem [#allocation2], %s189
        %p191 = pneg %p42
        %p192 = pneg %p39
        %p193 = pneg %p63
        %p194 = pneg %p60
        %p195 = pneg %p84
        %p196 = pneg %p81
        %p197 = pneg %p110
        %p198 = pneg %p107
        %s199 = sand.u32 %s97, 1
        %s200 = scalar_lea.sflag [#allocation4], %s199
        %s201 = sand.u32 %s97, 1
        %s202 = smul.addr %s201, 64
        %s203 = scalar_lea.vmem [#allocation7], %s202
        %v204 = vld [vmem:[%s177] sm:$0xff]
        %v205 = vld [vmem:[%s177 + $0x8] sm:$0xff]
        %v206 = vld [vmem:[%s177 + $0x10] sm:$0xff]
        %v207 = vld [vmem:[%s177 + $0x18] sm:$0xff]
        %v208 = vld [vmem:[%s177 + $0x20] sm:$0xff]
        %v209 = vld [vmem:[%s177 + $0x28] sm:$0xff]
        %v210 = vld [vmem:[%s177 + $0x30] sm:$0xff]
        %v211 = vld [vmem:[%s177 + $0x38] sm:$0xff]
        %v212 = vld [vmem:[#allocation5] sm:$0xff]
        %v213 = vld [vmem:[#allocation5 + $0x8] sm:$0xff]
        %v214 = vld [vmem:[#allocation5 + $0x10] sm:$0xff]
        %v215 = vld [vmem:[#allocation5 + $0x18] sm:$0xff]
        %v216 = vld [vmem:[#allocation5 + $0x20] sm:$0xff]
        %v217 = vld [vmem:[#allocation5 + $0x28] sm:$0xff]
        %v218 = vld [vmem:[#allocation5 + $0x30] sm:$0xff]
        %v219 = vld [vmem:[#allocation5 + $0x38] sm:$0xff]
        %v220 = vld [vmem:[#allocation5 + $0x40] sm:$0xff]
        %v221 = vld [vmem:[#allocation5 + $0x48] sm:$0xff]
        %v222 = vld [vmem:[#allocation5 + $0x50] sm:$0xff]
        %v223 = vld [vmem:[#allocation5 + $0x58] sm:$0xff]
        %v224 = vld [vmem:[%s2] sm:$0x1]
        %v226 = vlaneseq
        %v227 = vshrl.u32 %v226, 7
        %v228 = vsub.s32 0, %v227
        %v229 = vrot.slane %v224, %v228
        %vm231 = vcmask 785408
        %v233 = vsel %vm231, %v204, 0
        %v236 = vsel %vm231, %v205, 0
        %v239 = vsel %vm231, %v206, 0
        %v242 = vsel %vm231, %v207, 0
        %v245 = vsel %vm231, %v208, 0
        %v248 = vsel %vm231, %v209, 0
        %v251 = vsel %vm231, %v210, 0
        %v254 = vsel %vm231, %v211, 0
        %256 = vmatprep.subr.mxu0 0.0
        %257 = vmatpush1.msra.mxu0 0.0
        %258 = vmatprep.subr.mxu0 0.0
        %259 = vmatpush1.msra.mxu0 0.0
        %260 = vmatprep.subr.mxu0 0.0
        %261 = vmatpush1.msra.mxu0 0.0
        %262 = vmatprep.subr.mxu0 0.0
        %263 = vmatpush1.msra.mxu0 0.0
        %264 = vmatprep.subr.mxu0 0.0
        %265 = vmatpush1.msra.mxu0 %v223
        %266 = vmatprep.subr.mxu0 0.0
        %267 = vmatpush1.msra.mxu0 %v222
        %268 = vmatprep.subr.mxu0 0.0
        %269 = vmatpush1.msra.mxu0 %v221
        %270 = vmatprep.subr.mxu0 0.0
        %271 = vmatpush1.msra.mxu0 %v220
        %272 = vmatprep.subr.mxu0 0.0
        %273 = vmatpush1.msra.mxu0 %v219
        %274 = vmatprep.subr.mxu0 0.0
        %275 = vmatpush1.msra.mxu0 %v218
        %276 = vmatprep.subr.mxu0 0.0
        %277 = vmatpush1.msra.mxu0 %v217
        %278 = vmatprep.subr.mxu0 0.0
        %279 = vmatpush1.msra.mxu0 %v216
        %280 = vmatprep.subr.mxu0 0.0
        %281 = vmatpush1.msra.mxu0 %v215
        %282 = vmatprep.subr.mxu0 0.0
        %283 = vmatpush1.msra.mxu0 %v214
        %284 = vmatprep.subr.mxu0 0.0
        %285 = vmatpush1.msra.mxu0 %v213
        %286 = vmatprep.subr.mxu0 0.0
        %287 = vmatpush1.msra.mxu0 %v212
        %288 = vmatprep.subr.mxu0 0.0
        %289 = vmatpush2.msra.mxu0 0.0
        %290 = vmatprep.subr.mxu0 0.0
        %291 = vmatpush2.msra.mxu0 0.0
        %292 = vmatprep.subr.mxu0 0.0
        %293 = vmatpush2.msra.mxu0 0.0
        %294 = vmatprep.subr.mxu0 0.0
        %295 = vmatpush2.msra.mxu0 0.0
        %296 = vmatprep.subr.mxu0 0.0
        %297 = vmatpush2.msra.mxu0 0.0
        %298 = vmatprep.subr.mxu0 0.0
        %299 = vmatpush2.msra.mxu0 0.0
        %300 = vmatprep.subr.mxu0 0.0
        %301 = vmatpush2.msra.mxu0 0.0
        %302 = vmatprep.subr.mxu0 0.0
        %303 = vmatpush2.msra.mxu0 0.0
        %304 = vmatprep.subr.mxu0 0.0
        %305 = vmatpush2.msra.mxu0 0.0
        %306 = vmatprep.subr.mxu0 0.0
        %307 = vmatpush2.msra.mxu0 0.0
        %308 = vmatprep.subr.mxu0 0.0
        %309 = vmatpush2.msra.mxu0 0.0
        %310 = vmatprep.subr.mxu0 0.0
        %311 = vmatpush2.msra.mxu0 0.0
        %312 = vmatprep.subr.mxu0 0.0
        %313 = vmatpush2.msra.mxu0 0.0
        %314 = vmatprep.subr.mxu0 0.0
        %315 = vmatpush2.msra.mxu0 0.0
        %316 = vmatprep.subr.mxu0 0.0
        %317 = vmatpush2.msra.mxu0 0.0
        %318 = vmatprep.subr.mxu0 0.0
        %319 = vmatpush2.msra.mxu0 0.0
        %320 = vmatprep.mubr.f32.mxu0 0.0
        %321 = vmatmul.mubr.f32.gmra.mxu0 %v233
        %v322 = vpop.f32.mrf.mxu0
        %v323 = vadd.f32 %v229, %v322
        %v324 = vpop.f32.mrf.mxu0
        %325 = vmatprep.mubr.f32.mxu0 0.0
        %326 = vmatmul.mubr.f32.gmra.mxu0 %v236
        %v327 = vpop.f32.mrf.mxu0
        %v328 = vadd.f32 %v229, %v327
        %v329 = vpop.f32.mrf.mxu0
        %330 = vmatprep.mubr.f32.mxu0 0.0
        %331 = vmatmul.mubr.f32.gmra.mxu0 %v239
        %v332 = vpop.f32.mrf.mxu0
        %v333 = vadd.f32 %v229, %v332
        %v334 = vpop.f32.mrf.mxu0
        %335 = vmatprep.mubr.f32.mxu0 0.0
        %336 = vmatmul.mubr.f32.gmra.mxu0 %v242
        %v337 = vpop.f32.mrf.mxu0
        %v338 = vadd.f32 %v229, %v337
        %v339 = vpop.f32.mrf.mxu0
        %340 = vmatprep.mubr.f32.mxu0 0.0
        %341 = vmatmul.mubr.f32.gmra.mxu0 %v245
        %v342 = vpop.f32.mrf.mxu0
        %v343 = vadd.f32 %v229, %v342
        %v344 = vpop.f32.mrf.mxu0
        %345 = vmatprep.mubr.f32.mxu0 0.0
        %346 = vmatmul.mubr.f32.gmra.mxu0 %v248
        %v347 = vpop.f32.mrf.mxu0
        %v348 = vadd.f32 %v229, %v347
        %v349 = vpop.f32.mrf.mxu0
        %350 = vmatprep.mubr.f32.mxu0 0.0
        %351 = vmatmul.mubr.f32.gmra.mxu0 %v251
        %v352 = vpop.f32.mrf.mxu0
        %v353 = vadd.f32 %v229, %v352
        %v354 = vpop.f32.mrf.mxu0
        %355 = vmatprep.mubr.f32.mxu0 0.0
        %356 = vmatmul.mubr.f32.gmra.mxu0 %v254
        %v357 = vpop.f32.mrf.mxu0
        %v358 = vadd.f32 %v229, %v357
        %v359 = vpop.f32.mrf.mxu0
        %360 = vdwg.mxu0
        %361 = vst [vmem:[%s203] sm:$0xff] %v323
        %362 = vst [vmem:[%s203 + $0x8] sm:$0xff] %v328
        %363 = vst [vmem:[%s203 + $0x10] sm:$0xff] %v333
        %364 = vst [vmem:[%s203 + $0x18] sm:$0xff] %v338
        %365 = vst [vmem:[%s203 + $0x20] sm:$0xff] %v343
        %366 = vst [vmem:[%s203 + $0x28] sm:$0xff] %v348
        %367 = vst [vmem:[%s203 + $0x30] sm:$0xff] %v353
        %368 = vst [vmem:[%s203 + $0x38] sm:$0xff] %v358
        %s369 = sand.u32 %s97, 1
        %s370 = scalar_lea.sflag [#allocation4], %s369
        %s371 = sand.u32 %s97, 1
        %s372 = smul.addr %s371, 64
        %s373 = scalar_lea.vmem [#allocation7], %s372
        // Predicated region
        $region41: #{tpu_custom_call.1} parent=31 // pred_check
          %p374 = pneg %p107
        $region42: #{tpu_custom_call.1} parent=31 // pred_check_branch
          %376 = sbr.rel (%p374) target = $region44
        $region43: #{tpu_custom_call.1} parent=31 // pred_region
          %s378 = ssub.s32 1024, 1024
          %379 = vsyncadd %s370, %s378
          %s380 = smul.addr %s21, 8
          %s381 = smul.addr %s380, 128
          %s382 = scalar_lea.hbm %s3, %s381
          %s383 = sshll.u32 %s373, 4
          %s384 = int_to_ptr.vmem [resolvable:$true] %s383
          %389 = dma.vmem_to_hbm [thread:$0]  %s384, 1024, %s382, %s370, 128, 128, 8
        $region44: #{tpu_custom_call.1} parent=31 // pred_fallthru
          _
      $region32: #{tpu_custom_call.1} parent=5 // pred_fallthru
        _
      %p390 = scmp.le.s32.totalorder 2, %s16
      // Predicated region
      $region45: #{tpu_custom_call.1} parent=5 // pred_check
        %p391 = pneg %p390
      $region46: #{tpu_custom_call.1} parent=5 // pred_check_branch
        %393 = sbr.rel (%p391) target = $region48
      $region47: #{tpu_custom_call.1} parent=5 // pred_region
        %s394 = ssub.s32 %s16, 2
        // Predicated region
        $region49: #{tpu_custom_call.1} parent=47 // pred_check
          %p395 = pneg %p113
        $region50: #{tpu_custom_call.1} parent=47 // pred_check_branch
          %397 = sbr.rel (%p395) target = $region52
        $region51: #{tpu_custom_call.1} parent=47 // pred_region
          %s398 = sand.u32 %s98, 1
          %s399 = scalar_lea.sflag [#allocation4], %s398
          %s400 = sand.u32 %s98, 1
          %s401 = smul.addr %s400, 64
          %s402 = scalar_lea.vmem [#allocation7], %s401
          %403 = dma.done %s399, 1024
        $region52: #{tpu_custom_call.1} parent=47 // pred_fallthru
          _
      $region48: #{tpu_custom_call.1} parent=5 // pred_fallthru
        _
    $region6: #{tpu_custom_call.1} parent=1 // loop_footer
      %s20 = sadd.s32 1, %s16
    $region7: #{tpu_custom_call.1} parent=1 // loop_footer_branch
      %15 = sbr.rel target = $region3
    $region8: #{tpu_custom_call.1} parent=1 // loop_exit
      _
    %404 = vsyncpa [#allocation3], 1
    %s405 = scalar_lea.sflag [#allocation3], 1
    %406 = vsyncpa %s405, 1
    %407 = vsyncpa [#allocation6], 1
    %408 = vsyncpa [#allocation4], 1
    %s409 = scalar_lea.sflag [#allocation4], 1
    %410 = vsyncpa %s409, 1

</llo_original>
